<compile_context>
chip_gen: v7x
topology: tpu7x:2x2x1
jax: 0.10.0
libtpu: 0.0.40
codegen_flags: <defaults>
</compile_context>

<pallas_src>
import functools

import jax
import jax.numpy as jnp
from jax import lax
from jax.experimental import pallas as pl
from jax.experimental.pallas import tpu as pltpu


def _round_up(v, m):
    return ((v + m - 1) // m) * m


# ----------------------------------------------------------------------------
# Kernel 1: new_vertices = A @ x + b   (per-point 3x3 matvec on the VPU)
#
# packed rows (sublane axis, 15 rows):
#   0:3   -> column 0 of A  (A00, A10, A20)
#   3:6   -> column 1 of A  (A01, A11, A21)
#   6:9   -> column 2 of A  (A02, A12, A22)
#   9:12  -> x0, x1, x2
#   12:15 -> b0, b1, b2
# so  out[:, j, :] = sum_k A[j,k] * x[k] + b[j]  falls out of three
# sublane-broadcast FMAs and one full-tile, lane-dense store.
# ----------------------------------------------------------------------------
def _newverts_kernel(p_ref, out_ref):
    p = p_ref[...]                         # (1, 15, TN)
    x0 = p[:, 9:10, :]
    x1 = p[:, 10:11, :]
    x2 = p[:, 11:12, :]
    out_ref[...] = (p[:, 0:3, :] * x0
                    + p[:, 3:6, :] * x1
                    + p[:, 6:9, :] * x2
                    + p[:, 12:15, :])      # single lane-dense store


# ----------------------------------------------------------------------------
# Kernel 2: stiffness = (affine_weight[e0] - affine_weight[e1]) ** 2
#   Table (N, 12) is VMEM-resident (constant block index per batch, single
#   buffered).  Each grid step handles TE edges; indices for the chunk arrive
#   as blocked SMEM inputs.  The gather is vectorized in groups of `unroll`
#   rows: 2*unroll dynamic row loads -> two (unroll,12) values -> one sub,
#   one mul, one sublane-aligned store.
# ----------------------------------------------------------------------------
def _stiffness_kernel(e0_ref, e1_ref, table_ref, out_ref, *, chunk, unroll):
    def body(g, carry):
        row0 = pl.multiple_of(g * unroll, unroll)      # sublane-aligned group
        rows0 = []
        rows1 = []
        for u in range(unroll):                        # static unroll
            rows0.append(table_ref[pl.ds(e0_ref[row0 + u], 1), :])
            rows1.append(table_ref[pl.ds(e1_ref[row0 + u], 1), :])
        d = jnp.concatenate(rows0, axis=0) - jnp.concatenate(rows1, axis=0)
        out_ref[pl.ds(row0, unroll), :] = d * d        # one (unroll,12) store
        return carry

    lax.fori_loop(0, chunk // unroll, body, 0)


def local_affine_forward(A, b, x, edges):
    """A: (B,N,3,3) f32, b: (B,N,3,1) f32, x: (B,N,3) f32, edges: (E,2) int32."""
    B, N = A.shape[0], A.shape[1]
    E = edges.shape[0]
    dtype = x.dtype

    # ---- Kernel 1: per-point affine transform -------------------------------
    TN_CAP = 32768                      # 192*TN ~ 6.3 MiB dbl-buffered: safe on v5e
    if N <= TN_CAP:
        TN, Npad = N, N                 # one full-extent tile per batch, no pad
    else:
        TN = TN_CAP
        Npad = _round_up(N, TN)

    A_cols = jnp.transpose(A, (0, 1, 3, 2)).reshape(B, N, 9)          # column-major 3x3
    packed = jnp.concatenate([A_cols, x, b.reshape(B, N, 3)], axis=2)  # (B,N,15)
    if Npad != N:
        # pad before the transpose so pack+pad+transpose fuse into one pass
        packed = jnp.pad(packed, ((0, 0), (0, Npad - N), (0, 0)))
    packed = jnp.transpose(packed, (0, 2, 1))                          # (B,15,Npad)

    nv_t = pl.pallas_call(
        _newverts_kernel,
        out_shape=jax.ShapeDtypeStruct((B, 3, Npad), dtype),
        grid_spec=pltpu.PrefetchScalarGridSpec(
            num_scalar_prefetch=0,
            grid=(B, Npad // TN),
            in_specs=[pl.BlockSpec((1, 15, TN), lambda i, t: (i, 0, t))],
            out_specs=pl.BlockSpec((1, 3, TN), lambda i, t: (i, 0, t)),
        ),
        compiler_params=pltpu.CompilerParams(
            dimension_semantics=("parallel", "parallel")),
    )(packed)
    # TODO(synk): consumers that accept (B,3,N) can skip this transpose; kept
    # only because the module contract returns (B,N,3).
    new_vertices = jnp.transpose(nv_t[:, :, :N], (0, 2, 1))           # (B, N, 3)

    # ---- Kernel 2: edge stiffness -------------------------------------------
    # affine_weight rows laid out exactly like cat([A, b], dim=3).reshape(.,12)
    aw = jnp.concatenate([A, b], axis=3).reshape(B, N, 12)            # (B, N, 12)

    UNROLL = 8
    TE = min(1024, _round_up(E, UNROLL))                              # edges / grid step
    Epad = _round_up(E, TE)
    n_chunks = Epad // TE

    e0 = edges[:, 0].astype(jnp.int32)
    e1 = edges[:, 1].astype(jnp.int32)
    if Epad != E:
        e0 = jnp.pad(e0, (0, Epad - E))     # pad idx 0: row0 - row0 = 0, sliced off
        e1 = jnp.pad(e1, (0, Epad - E))

    # VMEM budget: single-buffered resident table + small output/index buffers.
    table_vmem = _round_up(N, 8) * 128 * 4              # (N,12) lane-pads to 128
    try:
        phys_vmem = pltpu.get_tpu_info().vmem_capacity_bytes
    except Exception:
        phys_vmem = 64 * 2**20                          # conservative (v7x per-TC)
    vmem_cap = (phys_vmem * 3) // 4                     # ~96 MiB v5e/v6e, ~48 MiB v7x
    vmem_limit = int(min(vmem_cap, max(32 * 2**20, table_vmem + (8 << 20))))
    # TODO(synk): once table_vmem exceeds vmem_cap (very large N), tile the
    # table along N or gather rows with per-edge DMA from HBM instead.

    # Batch and chunk folded into one parallel axis so v7x megacore splits
    # edge chunks even when B == 1.
    grid = (B * n_chunks,)

    stiff_flat = pl.pallas_call(
        functools.partial(_stiffness_kernel, chunk=TE, unroll=UNROLL),
        out_shape=jax.ShapeDtypeStruct((B, Epad, 12), dtype),
        grid_spec=pltpu.PrefetchScalarGridSpec(
            num_scalar_prefetch=0,
            grid=grid,
            in_specs=[
                # per-chunk edge indices, resident in SMEM (O(TE) regardless of E)
                pl.BlockSpec((TE,), lambda g: (g % n_chunks,),
                             memory_space=pltpu.MemorySpace.SMEM),
                pl.BlockSpec((TE,), lambda g: (g % n_chunks,),
                             memory_space=pltpu.MemorySpace.SMEM),
                # full-extent table, constant block index per batch, single buffer
                pl.BlockSpec((None, N, 12), lambda g: (g // n_chunks, 0, 0),
                             pipeline_mode=pl.Buffered(1)),
            ],
            out_specs=pl.BlockSpec((None, TE, 12),
                                   lambda g: (g // n_chunks, g % n_chunks, 0)),
        ),
        compiler_params=pltpu.CompilerParams(
            dimension_semantics=("parallel",),
            vmem_limit_bytes=vmem_limit),
    )(e0, e1, aw)
    stiffness = stiff_flat[:, :E, :].reshape(B, E, 3, 4)

    return new_vertices, stiffness


def _reference(A, b, x, edges):
    new_vertices = jnp.einsum("bnij,bnj->bni", A, x) + b[..., 0]
    aw = jnp.concatenate([A, b], axis=3)
    w1 = aw[:, edges[:, 0]]
    w2 = aw[:, edges[:, 1]]
    return new_vertices, (w1 - w2) ** 2


if __name__ == "__main__":
    B, N, E = 2, 256, 64
    key = jax.random.PRNGKey(0)
    k_a, k_b, k_x, k_e0, k_e1 = jax.random.split(key, 5)

    # Module init is identity A / zero b; perturb so numerics are non-trivial.
    eye = jnp.broadcast_to(jnp.eye(3, dtype=jnp.float32), (B, N, 3, 3))
    A = eye + 0.1 * jax.random.normal(k_a, (B, N, 3, 3), dtype=jnp.float32)
    b = 0.1 * jax.random.normal(k_b, (B, N, 3, 1), dtype=jnp.float32)

    x = jax.random.normal(k_x, (B, N, 3), dtype=jnp.float32)
    edges = jnp.stack(
        [jax.random.randint(k_e0, (E,), 0, N, dtype=jnp.int32),
         jax.random.randint(k_e1, (E,), 0, N, dtype=jnp.int32)], axis=1)

    nv, stiff = local_affine_forward(A, b, x, edges)
    jax.block_until_ready((nv, stiff))

    nv_ref, stiff_ref = _reference(A, b, x, edges)
    assert nv.shape == (B, N, 3) and stiff.shape == (B, E, 3, 4)
    assert jnp.allclose(nv, nv_ref, atol=1e-5, rtol=1e-5)
    assert jnp.allclose(stiff, stiff_ref, atol=1e-5, rtol=1e-5)

    print("KERNEL_OK")
</pallas_src>

<mosaic_0001>
module attributes {stable_mosaic.version = 11 : i64} {
  func.func @_newverts_kernel(%arg0: i32, %arg1: i32, %arg2: memref<1x15x256xf32, #tpu.memory_space<vmem>>, %arg3: memref<1x3x256xf32, #tpu.memory_space<vmem>>) attributes {dimension_semantics = [#tpu.dimension_semantics<parallel>, #tpu.dimension_semantics<parallel>], iteration_bounds = array<i64: 2, 1>, scalar_prefetch = 0 : i64, scratch_operands = 0 : i64, tpu.core_type = #tpu.core_type<tc>, window_params = [{transform_indices = @transform_0, window_bounds = array<i64: 1, 15, 256>}, {transform_indices = @transform_1, window_bounds = array<i64: 1, 3, 256>}]} {
    %c0 = arith.constant 0 : index
    %c0_0 = arith.constant 0 : index
    %c0_1 = arith.constant 0 : index
    %0 = vector.load %arg2[%c0, %c0_0, %c0_1] : memref<1x15x256xf32, #tpu.memory_space<vmem>>, vector<1x15x256xf32>
    %1 = vector.extract_strided_slice %0 {offsets = [0, 9, 0], sizes = [1, 1, 256], strides = [1, 1, 1]} : vector<1x15x256xf32> to vector<1x1x256xf32>
    %2 = vector.extract_strided_slice %0 {offsets = [0, 10, 0], sizes = [1, 1, 256], strides = [1, 1, 1]} : vector<1x15x256xf32> to vector<1x1x256xf32>
    %3 = vector.extract_strided_slice %0 {offsets = [0, 11, 0], sizes = [1, 1, 256], strides = [1, 1, 1]} : vector<1x15x256xf32> to vector<1x1x256xf32>
    %4 = vector.extract_strided_slice %0 {offsets = [0, 0, 0], sizes = [1, 3, 256], strides = [1, 1, 1]} : vector<1x15x256xf32> to vector<1x3x256xf32>
    %5 = vector.broadcast %1 : vector<1x1x256xf32> to vector<1x3x256xf32>
    %6 = arith.mulf %4, %5 : vector<1x3x256xf32>
    %7 = vector.extract_strided_slice %0 {offsets = [0, 3, 0], sizes = [1, 3, 256], strides = [1, 1, 1]} : vector<1x15x256xf32> to vector<1x3x256xf32>
    %8 = vector.broadcast %2 : vector<1x1x256xf32> to vector<1x3x256xf32>
    %9 = arith.mulf %7, %8 : vector<1x3x256xf32>
    %10 = arith.addf %6, %9 : vector<1x3x256xf32>
    %11 = vector.extract_strided_slice %0 {offsets = [0, 6, 0], sizes = [1, 3, 256], strides = [1, 1, 1]} : vector<1x15x256xf32> to vector<1x3x256xf32>
    %12 = vector.broadcast %3 : vector<1x1x256xf32> to vector<1x3x256xf32>
    %13 = arith.mulf %11, %12 : vector<1x3x256xf32>
    %14 = arith.addf %10, %13 : vector<1x3x256xf32>
    %15 = vector.extract_strided_slice %0 {offsets = [0, 12, 0], sizes = [1, 3, 256], strides = [1, 1, 1]} : vector<1x15x256xf32> to vector<1x3x256xf32>
    %16 = arith.addf %14, %15 : vector<1x3x256xf32>
    %c0_2 = arith.constant 0 : index
    %c0_3 = arith.constant 0 : index
    %c0_4 = arith.constant 0 : index
    %17 = vector.load %arg3[%c0_2, %c0_3, %c0_4] : memref<1x3x256xf32, #tpu.memory_space<vmem>>, vector<1x3x256xf32>
    tpu.vector_store %arg3[%c0_2, %c0_3, %c0_4], %16 {strides = array<i32>} : memref<1x3x256xf32, #tpu.memory_space<vmem>>, vector<1x3x256xf32>,
    return
  }
  func.func @transform_0(%arg0: i32, %arg1: i32) -> (i32, i32, i32) {
    %c0_i32 = arith.constant 0 : i32
    %c0_i32_0 = arith.constant 0 : i32
    return %arg0, %c0_i32, %arg1 : i32, i32, i32
  }
  func.func @transform_1(%arg0: i32, %arg1: i32) -> (i32, i32, i32) {
    %c0_i32 = arith.constant 0 : i32
    %c0_i32_0 = arith.constant 0 : i32
    return %arg0, %c0_i32, %arg1 : i32, i32, i32
  }
}

</mosaic_0001>

<llo_original>
// kernel: tpu_custom_call.1
$region0: #{tpu_custom_call.1}
  #allocation0 [shape = 'u32[]', space=smem, size = 0x4, offset = 0x4, fixed_abs, tag = 'smem constant byte address 0x4 - core index']
  #allocation1 [shape = 'u32[144,128]{1,0:T(1,128)}', space=vmem, size = 0x12000, scoped, tag = 'internal scratch']
  %s0 = inlined_call_operand.vmem [shape: f32[2,15,256], index: 0, kind: input, shape index: {}]
  %s1 = inlined_call_operand.vmem [shape: f32[2,3,256], index: 1, kind: output, shape index: {}]
  %s2 = sld [smem:[#allocation0]]
  $region37: #{tpu_custom_call.1} parent=0
    _
  %s4 = ssub.s32 1, %s2
  %s5 = scalar_select 0, %s4, %s2
  loop: start=0, step=1, limit=4
  $region2: #{tpu_custom_call.1} parent=0 // loop_pre_header
    _
  $region3: #{tpu_custom_call.1} parent=0 // loop_header
    %s7 = sphi 0, %s11
    %p8 = scmp.ge.s32.totalorder %s7, 4
    %s14 = sphi 0, %s26
    %s15 = sphi 0, %s22
    %s16 = sphi 0, %s14
    %s17 = sphi 0, %s15
    %s18 = sphi 0, %s16
    %s19 = sphi 0, %s17
    %s31 = sphi 0, %s33
    %s34 = sphi 0, %s31
    %s35 = sphi 0, %s34
    %s51 = sphi 0, %s35
    %s59 = sphi 0, %s61
    %s62 = sphi 0, %s59
    %s63 = sphi 0, %s62
    %s79 = sphi 0, %s63
  $region4: #{tpu_custom_call.1} parent=0 // loop_header_branch
    %10 = sbr.rel (%p8) target = $region8
  $region5: #{tpu_custom_call.1} parent=0 // loop_body
    %s12 = ssub.s32 %s7, 1
    %s13 = ssub.s32 %s7, 2
    %s20 = sadd.s32 1, %s15
    %p21 = scmp.ge.s32.totalorder %s20, 1
    %s22 = scalar_select %p21, 0, %s20
    %s23 = sadd.s32 1, %s14
    %s24 = scalar_select %p21, %s23, %s14
    %p25 = scmp.ge.s32.totalorder %s24, 2
    %s26 = scalar_select %p25, 0, %s24
    %s27 = ssub.s32 %s14, %s26
    %s28 = ssub.s32 %s15, %s22
    %s29 = sor.u32 %s27, %s28
    %p30 = scmp.eq.s32.totalorder %s29, 0
    %s32 = sadd.s32 %s31, 1
    %s33 = scalar_select %p30, %s31, %s32
    %p36 = pneg %p30
    %p37 = scmp.eq.s32.totalorder %s7, 1
    %p38 = por %p36, %p37
    %p39 = scmp.ne.s32.totalorder %s31, %s34
    %p40 = scmp.eq.s32.totalorder %s7, 0
    %p41 = por %p39, %p40
    %p42 = scmp.ne.s32.totalorder %s31, %s34
    %p43 = scmp.eq.s32.totalorder %s12, 1
    %p44 = por %p42, %p43
    %p45 = scmp.ne.s32.totalorder %s34, %s35
    %p46 = scmp.eq.s32.totalorder %s12, 0
    %p47 = por %p45, %p46
    %p48 = scmp.ne.s32.totalorder %s34, %s35
    %p49 = scmp.eq.s32.totalorder %s13, 1
    %p50 = por %p48, %p49
    %p52 = scmp.ne.s32.totalorder %s35, %s51
    %p53 = scmp.eq.s32.totalorder %s13, 0
    %p54 = por %p52, %p53
    %s55 = ssub.s32 %s14, %s26
    %s56 = ssub.s32 %s15, %s22
    %s57 = sor.u32 %s55, %s56
    %p58 = scmp.eq.s32.totalorder %s57, 0
    %s60 = sadd.s32 %s59, 1
    %s61 = scalar_select %p58, %s59, %s60
    %p64 = pneg %p58
    %p65 = scmp.eq.s32.totalorder %s7, 1
    %p66 = por %p64, %p65
    %p67 = scmp.ne.s32.totalorder %s59, %s62
    %p68 = scmp.eq.s32.totalorder %s7, 0
    %p69 = por %p67, %p68
    %p70 = scmp.ne.s32.totalorder %s59, %s62
    %p71 = scmp.eq.s32.totalorder %s12, 1
    %p72 = por %p70, %p71
    %p73 = scmp.ne.s32.totalorder %s62, %s63
    %p74 = scmp.eq.s32.totalorder %s12, 0
    %p75 = por %p73, %p74
    %p76 = scmp.ne.s32.totalorder %s62, %s63
    %p77 = scmp.eq.s32.totalorder %s13, 1
    %p78 = por %p76, %p77
    %p80 = scmp.ne.s32.totalorder %s63, %s79
    %p81 = scmp.eq.s32.totalorder %s13, 0
    %p82 = por %p80, %p81
    %p83 = scmp.le.s32.totalorder 1, %s7
    %p84 = scmp.lt.s32.totalorder %s7, 3
    %p85 = pnand %p83, %p84
    %p86 = pneg %p85
    // Predicated region
    $region9: #{tpu_custom_call.1} parent=5 // pred_check
      _
    $region10: #{tpu_custom_call.1} parent=5 // pred_check_branch
      %88 = sbr.rel (%p85) target = $region12
    $region11: #{tpu_custom_call.1} parent=5 // pred_region
      %s89 = ssub.s32 %s7, 1
    $region12: #{tpu_custom_call.1} parent=5 // pred_fallthru
      _
    %p90 = scmp.lt.s32.totalorder %s7, 2
    // Predicated region
    $region13: #{tpu_custom_call.1} parent=5 // pred_check
      %p91 = pneg %p90
    $region14: #{tpu_custom_call.1} parent=5 // pred_check_branch
      %93 = sbr.rel (%p91) target = $region16
    $region15: #{tpu_custom_call.1} parent=5 // pred_region
      // Predicated region
      $region17: #{tpu_custom_call.1} parent=15 // pred_check
        %p94 = pneg %p41
      $region18: #{tpu_custom_call.1} parent=15 // pred_check_branch
        %96 = sbr.rel (%p94) target = $region20
      $region19: #{tpu_custom_call.1} parent=15 // pred_region
        %s97 = smul.u32 2, %s15
        %p98 = scmp.lt.s32.totalorder %s14, 1
        %s99 = scalar_select %p98, %s14, 1
        %p100 = scmp.lt.s32.totalorder %s97, 1
        %s101 = scalar_select %p100, %s97, 1
        %s102 = smul.addr %s99, 4
        %s103 = sadd.s32 %s101, %s102
        %s104 = smul.addr %s103, 8
        %s105 = scalar_lea.vmem %s0, %s104
        %s106 = smul.u32 2, %s15
      $region20: #{tpu_custom_call.1} parent=15 // pred_fallthru
        _
    $region16: #{tpu_custom_call.1} parent=5 // pred_fallthru
      _
    %p107 = scmp.le.s32.totalorder 1, %s7
    %p108 = scmp.lt.s32.totalorder %s7, 3
    %p109 = pnand %p107, %p108
    %p110 = pneg %p109
    // Predicated region
    $region21: #{tpu_custom_call.1} parent=5 // pred_check
      _
    $region22: #{tpu_custom_call.1} parent=5 // pred_check_branch
      %112 = sbr.rel (%p109) target = $region24
    $region23: #{tpu_custom_call.1} parent=5 // pred_region
      %s113 = ssub.s32 %s7, 1
      %s114 = smul.u32 2, %s17
      %p115 = scmp.lt.s32.totalorder %s16, 1
      %s116 = scalar_select %p115, %s16, 1
      %p117 = scmp.lt.s32.totalorder %s114, 1
      %s118 = scalar_select %p117, %s114, 1
      %s119 = smul.addr %s116, 4
      %s120 = sadd.s32 %s118, %s119
      %s121 = smul.addr %s120, 8
      %s122 = scalar_lea.vmem %s0, %s121
      %p123 = pneg %p47
      %p124 = pneg %p44
      %p125 = pneg %p75
      %p126 = pneg %p72
      %s127 = smul.u32 2, %s17
      %p128 = scmp.lt.s32.totalorder %s16, 1
      %s129 = scalar_select %p128, %s16, 1
      %p130 = scmp.lt.s32.totalorder %s127, 1
      %s131 = scalar_select %p130, %s127, 1
      %s132 = smul.addr %s129, 2
      %s133 = sadd.s32 %s131, %s132
      %s134 = smul.addr %s133, 4
      %s135 = scalar_lea.vmem %s1, %s134
      %s136 = smul.u32 2, %s17
      %p137 = scmp.lt.s32.totalorder %s16, 1
      %s138 = scalar_select %p137, %s16, 1
      %p139 = scmp.lt.s32.totalorder %s136, 1
      %s140 = scalar_select %p139, %s136, 1
      %s141 = smul.addr %s138, 4
      %s142 = sadd.s32 %s140, %s141
      %s143 = smul.addr %s142, 8
      %s144 = scalar_lea.vmem %s0, %s143
      %s145 = smul.u32 2, %s17
      %s146 = smul.u32 2, %s17
      %p147 = scmp.lt.s32.totalorder %s16, 1
      %s148 = scalar_select %p147, %s16, 1
      %p149 = scmp.lt.s32.totalorder %s146, 1
      %s150 = scalar_select %p149, %s146, 1
      %s151 = smul.addr %s148, 2
      %s152 = sadd.s32 %s150, %s151
      %s153 = smul.addr %s152, 4
      %s154 = scalar_lea.vmem %s1, %s153
      %s155 = smul.u32 2, %s17
      %v156 = vld [vmem:[%s144] sm:$0xff]
      %v157 = vld [vmem:[%s144 + $0x8] sm:$0xff]
      %v158 = vld [vmem:[%s144 + $0x10] sm:$0x7f]
      %v159 = vld [vmem:[%s144 + $0x18] sm:$0x7f]
      %v160 = vlaneseq
      %v161 = vshrl.u32 %v160, 7
      %v162 = vsub.s32 1, %v161
      %v163 = vrot.slane %v158, %v162
      %v164 = vlaneseq
      %v165 = vshrl.u32 %v164, 7
      %v166 = vsub.s32 1, %v165
      %v167 = vrot.slane %v159, %v166
      %v168 = vmul.f32 %v156, %v163
      %v169 = vmul.f32 %v157, %v167
      %v170 = vlaneseq
      %v171 = vshrl.u32 %v170, 7
      %v172 = vsub.s32 2, %v171
      %v173 = vrot.slane %v158, %v172
      %v174 = vlaneseq
      %v175 = vshrl.u32 %v174, 7
      %v176 = vsub.s32 2, %v175
      %v177 = vrot.slane %v159, %v176
      %v178 = vmul.f32 %v156, %v173
      %v179 = vmul.f32 %v157, %v177
      %v182 = vrot.slane %v178, 3
      %v183 = vrot.slane %v179, 3
      %v186 = vadd.f32 %v168, %v182
      %v187 = vadd.f32 %v169, %v183
      %v188 = vlaneseq
      %v189 = vshrl.u32 %v188, 7
      %v190 = vsub.s32 3, %v189
      %v191 = vrot.slane %v158, %v190
      %v192 = vlaneseq
      %v193 = vshrl.u32 %v192, 7
      %v194 = vsub.s32 3, %v193
      %v195 = vrot.slane %v159, %v194
      %v196 = vmul.f32 %v156, %v191
      %v197 = vmul.f32 %v157, %v195
      %v198 = vmul.f32 %v158, %v191
      %v199 = vmul.f32 %v159, %v195
      %vm204 = vcmask 1041408
      %v205 = vrot.slane %v196, 6
      %v206 = vrot.slane %v198, 6
      %v207 = vsel %vm204, %v205, %v206
      %v208 = vrot.slane %v197, 6
      %v209 = vrot.slane %v199, 6
      %v210 = vsel %vm204, %v208, %v209
      %v213 = vadd.f32 %v186, %v207
      %v214 = vadd.f32 %v187, %v210
      %v217 = vrot.slane %v158, 4
      %v218 = vrot.slane %v159, 4
      %v221 = vadd.f32 %v213, %v217
      %v222 = vadd.f32 %v214, %v218
      %v225 = vcombine.low %v221, %v222
      %227 = vst [vmem:[%s154] sm:$0x77] %v225
      %s228 = smul.u32 2, %s17
      %p229 = scmp.lt.s32.totalorder %s16, 1
      %s230 = scalar_select %p229, %s16, 1
      %p231 = scmp.lt.s32.totalorder %s228, 1
      %s232 = scalar_select %p231, %s228, 1
      %s233 = smul.addr %s230, 2
      %s234 = sadd.s32 %s232, %s233
      %s235 = smul.addr %s234, 4
      %s236 = scalar_lea.vmem %s1, %s235
      // Predicated region
      $region25: #{tpu_custom_call.1} parent=23 // pred_check
        %p237 = pneg %p72
      $region26: #{tpu_custom_call.1} parent=23 // pred_check_branch
        %239 = sbr.rel (%p237) target = $region28
      $region27: #{tpu_custom_call.1} parent=23 // pred_region
        %s240 = smul.u32 2, %s17
      $region28: #{tpu_custom_call.1} parent=23 // pred_fallthru
        _
    $region24: #{tpu_custom_call.1} parent=5 // pred_fallthru
      _
    %p241 = scmp.le.s32.totalorder 2, %s7
    // Predicated region
    $region29: #{tpu_custom_call.1} parent=5 // pred_check
      %p242 = pneg %p241
    $region30: #{tpu_custom_call.1} parent=5 // pred_check_branch
      %244 = sbr.rel (%p242) target = $region32
    $region31: #{tpu_custom_call.1} parent=5 // pred_region
      %s245 = ssub.s32 %s7, 2
      // Predicated region
      $region33: #{tpu_custom_call.1} parent=31 // pred_check
        %p246 = pneg %p78
      $region34: #{tpu_custom_call.1} parent=31 // pred_check_branch
        %248 = sbr.rel (%p246) target = $region36
      $region35: #{tpu_custom_call.1} parent=31 // pred_region
        %s249 = smul.u32 2, %s19
        %p250 = scmp.lt.s32.totalorder %s18, 1
        %s251 = scalar_select %p250, %s18, 1
        %p252 = scmp.lt.s32.totalorder %s249, 1
        %s253 = scalar_select %p252, %s249, 1
        %s254 = smul.addr %s251, 2
        %s255 = sadd.s32 %s253, %s254
        %s256 = smul.addr %s255, 4
        %s257 = scalar_lea.vmem %s1, %s256
      $region36: #{tpu_custom_call.1} parent=31 // pred_fallthru
        _
    $region32: #{tpu_custom_call.1} parent=5 // pred_fallthru
      _
  $region6: #{tpu_custom_call.1} parent=0 // loop_footer
    %s11 = sadd.s32 1, %s7
  $region7: #{tpu_custom_call.1} parent=0 // loop_footer_branch
    %6 = sbr.rel target = $region3
  $region8: #{tpu_custom_call.1} parent=0 // loop_exit
    _

</llo_original>
